<compile_context>
chip_gen: v7x
topology: tpu7x:2x2x1
jax: 0.10.0
libtpu: 0.0.40
codegen_flags: <defaults>
</compile_context>

<pallas_src>
import functools

import jax
import jax.numpy as jnp
from jax.experimental import pallas as pl
from jax.experimental.pallas import tpu as pltpu

_SUBLANE_BF16 = 16  # bf16 sublane packing; channels are padded to this


def _resblock_kernel(x_ref, mask_ref, w3_ref, w1_ref, t1_ref, t2_ref, o_ref, *, W):
    """One grid step = one batch chunk folded onto the lane axis.

    x_ref   : (Cp, L)     f32   L = B_chunk*H*W; channels on sublanes, batch*spatial on lanes
    mask_ref: (9, Cp, L)  bf16  0/1 validity per 3x3 tap (zero padding), pre-broadcast over Cp
    w3_ref  : (Cp, 9*Cp)  bf16  3x3 conv weights (BN1 scale folded), tap-major K
    w1_ref  : (Cp, Cp)    bf16  1x1 conv weights (BN2 scale folded)
    t1_ref  : (Cp, 1)     f32   BN1 shift (conv1 bias folded in)
    t2_ref  : (Cp, 1)     f32   BN2 shift (conv2 bias folded in)
    o_ref   : (Cp, L)     f32
    """
    L = x_ref.shape[1]
    x = x_ref[...]                          # (Cp, L) f32
    xr = jnp.maximum(x, 0.0)                # leading ReLU (relu(0)=0, so zero-pad commutes)

    # Fused im2col (9*Cp, L): each 3x3 tap is a lane rotation (XLU) of the flattened
    # batch*spatial axis plus a 0/1 boundary mask (bf16 VPU).  Tap blocks are Cp=16
    # rows each, so the concat boundaries land exactly on bf16 vreg tiles.
    taps = []
    for k in range(9):
        dh, dw = divmod(k, 3)
        s = (dh - 1) * W + (dw - 1)         # flattened source offset
        if s == 0:
            taps.append(xr.astype(jnp.bfloat16))          # center tap: no shift, no mask
        else:
            rolled = pltpu.roll(xr, shift=(-s) % L, axis=1)
            taps.append(rolled.astype(jnp.bfloat16) * mask_ref[k])   # mask already (Cp, L)
    im2col = jnp.concatenate(taps, axis=0)                 # (9*Cp, L) bf16, tile-aligned

    # Conv3x3 (+ folded BN1 scale) as a single MXU matmul, then BN1 shift + ReLU (f32).
    acc = jnp.dot(w3_ref[...], im2col, preferred_element_type=jnp.float32)   # (Cp, L)
    y = jnp.maximum(acc + t1_ref[...], 0.0)

    # Conv1x1 (+ folded BN2 scale) as a second matmul (Cp=16 fills a sublane tile).
    # TODO(synk): for Cp <= 8 this could be VPU broadcast-FMA instead of an MXU op.
    z = jnp.dot(w1_ref[...], y.astype(jnp.bfloat16), preferred_element_type=jnp.float32)

    # BN2 shift + residual add; lane-dense store (last dim = L, multiple of 128).
    o_ref[...] = x + z + t2_ref[...]


def _batch_chunk(N, HW):
    """Batch chunk per grid step: 2 parallel steps when the batch splits evenly
    (v7x dual-TC); otherwise one fat step (v5e/v6e single TC)."""
    if N >= 2 and N % 2 == 0 and ((N // 2) * HW) % 128 == 0:
        return N // 2
    return N


def prepare_params(params, x_shape, eps=1e-5):
    """One-time parameter prep, hoisted off the serving path.

    Folds BN scales into the conv weights and all biases/means into per-channel
    shifts, pads channels to the bf16 sublane tile, lays the 3x3 weights out
    tap-major, and builds the per-tap zero-pad masks pre-broadcast over channels.
    """
    w3, b3, g1, bb1, m1, v1, w1, b1, g2, bb2, m2, v2 = params
    N, C, H, W = x_shape
    HW = H * W
    Cp = ((C + _SUBLANE_BF16 - 1) // _SUBLANE_BF16) * _SUBLANE_BF16
    b_chunk = _batch_chunk(N, HW)
    L = b_chunk * HW

    s1 = g1 / jnp.sqrt(v1 + eps)
    s2 = g2 / jnp.sqrt(v2 + eps)
    t1 = jnp.zeros((Cp, 1), jnp.float32).at[:C, 0].set(bb1 - m1 * s1 + b3 * s1)
    t2 = jnp.zeros((Cp, 1), jnp.float32).at[:C, 0].set(bb2 - m2 * s2 + b1 * s2)

    # (C_out, C_in, 3, 3) OIHW -> padded (Cp, 9*Cp); K order = (dh*3+dw)*Cp + c_in,
    # matching the kernel's im2col row order.  bf16 operands, f32 accumulation.
    w3s = w3 * s1[:, None, None, None]
    w3p = jnp.zeros((Cp, Cp, 3, 3), jnp.float32).at[:C, :C].set(w3s)
    w3mat = jnp.transpose(w3p, (0, 2, 3, 1)).reshape(Cp, 9 * Cp).astype(jnp.bfloat16)

    w1p = jnp.zeros((Cp, Cp), jnp.float32).at[:C, :C].set(w1 * s2[:, None])
    w1mat = w1p.astype(jnp.bfloat16)

    # Per-tap 0/1 validity masks over the flattened (batch-chunk, H, W) lane axis,
    # tiled per image and pre-broadcast over channels so the kernel never emits
    # broadcast relayouts.  bf16: exact 0/1 values.
    hh = jnp.arange(H)
    ww = jnp.arange(W)
    masks = []
    for dh in range(3):
        for dw in range(3):
            mh = ((hh + dh - 1) >= 0) & ((hh + dh - 1) <= H - 1)
            mw = ((ww + dw - 1) >= 0) & ((ww + dw - 1) <= W - 1)
            masks.append(jnp.tile((mh[:, None] & mw[None, :]).reshape(HW), (b_chunk,)))
    mask9 = jnp.stack(masks, axis=0).astype(jnp.bfloat16)        # (9, L)
    mask9 = jnp.broadcast_to(mask9[:, None, :], (9, Cp, L))      # (9, Cp, L)

    return (mask9, w3mat, w1mat, t1, t2)


@jax.jit
def resblock_forward(x_nchw, prepared):
    """x_nchw: (N, C, H, W) float32 -> (N, C, H, W) float32 (eval-mode BatchNorm)."""
    mask9, w3mat, w1mat, t1, t2 = prepared
    N, C, H, W = x_nchw.shape
    HW = H * W
    Cp = w3mat.shape[0]
    b_chunk = _batch_chunk(N, HW)
    L = b_chunk * HW
    assert mask9.shape == (9, Cp, L), "prepared params built for a different shape"
    grid_n = N // b_chunk

    # Channel-major with batch folded onto the lane axis; pad channels to Cp.
    x_cl = jnp.transpose(x_nchw, (1, 0, 2, 3)).reshape(C, N * HW).astype(jnp.float32)
    x_cl = jnp.pad(x_cl, ((0, Cp - C), (0, 0)))

    kernel = functools.partial(_resblock_kernel, W=W)
    out = pl.pallas_call(
        kernel,
        out_shape=jax.ShapeDtypeStruct((Cp, N * HW), jnp.float32),
        grid_spec=pltpu.PrefetchScalarGridSpec(
            num_scalar_prefetch=0,
            grid=(grid_n,),
            in_specs=[
                pl.BlockSpec((Cp, L), lambda n: (0, n)),
                pl.BlockSpec((9, Cp, L), lambda n: (0, 0, 0)),
                pl.BlockSpec((Cp, 9 * Cp), lambda n: (0, 0)),
                pl.BlockSpec((Cp, Cp), lambda n: (0, 0)),
                pl.BlockSpec((Cp, 1), lambda n: (0, 0)),
                pl.BlockSpec((Cp, 1), lambda n: (0, 0)),
            ],
            out_specs=pl.BlockSpec((Cp, L), lambda n: (0, n)),
        ),
        compiler_params=pltpu.CompilerParams(
            dimension_semantics=("parallel",)),
    )(x_cl, mask9, w3mat, w1mat, t1, t2)

    # Drop channel padding, back to NCHW.
    return jnp.transpose(out[:C].reshape(C, N, H, W), (1, 0, 2, 3))


def resblock_reference(x, params):
    """Pure-JAX/XLA reference (eval-mode BatchNorm) for correctness checking."""
    w3, b3, g1, bb1, m1, v1, w1, b1, g2, bb2, m2, v2 = params
    eps = 1e-5

    def bn(h, g, b, m, v):
        return ((h - m[None, :, None, None])
                / jnp.sqrt(v[None, :, None, None] + eps)
                * g[None, :, None, None] + b[None, :, None, None])

    h = jnp.maximum(x, 0.0)
    h = jax.lax.conv_general_dilated(
        h, w3, window_strides=(1, 1), padding=((1, 1), (1, 1)),
        dimension_numbers=("NCHW", "OIHW", "NCHW"),
        precision=jax.lax.Precision.HIGHEST)
    h = h + b3[None, :, None, None]
    h = jnp.maximum(bn(h, g1, bb1, m1, v1), 0.0)
    h = jnp.einsum("oc,nchw->nohw", w1, h,
                   precision=jax.lax.Precision.HIGHEST)
    h = h + b1[None, :, None, None]
    h = bn(h, g2, bb2, m2, v2)
    return x + h


def init_params(key, dim):
    ks = jax.random.split(key, 8)
    w3 = 0.1 * jax.random.normal(ks[0], (dim, dim, 3, 3), jnp.float32)  # OIHW
    b3 = 0.1 * jax.random.normal(ks[1], (dim,), jnp.float32)
    # BN1 (eval-mode stats)
    g1 = 1.0 + 0.1 * jax.random.normal(ks[2], (dim,), jnp.float32)
    bb1 = 0.1 * jax.random.normal(ks[3], (dim,), jnp.float32)
    m1 = 0.05 * jax.random.normal(ks[4], (dim,), jnp.float32)
    v1 = 1.0 + 0.1 * jnp.abs(jax.random.normal(ks[5], (dim,), jnp.float32))
    # 1x1 conv
    w1 = 0.1 * jax.random.normal(ks[6], (dim, dim), jnp.float32)        # (C_out, C_in)
    b1 = 0.1 * jax.random.normal(ks[7], (dim,), jnp.float32)
    # BN2 (eval-mode stats) — deterministic simple values
    g2 = jnp.ones((dim,), jnp.float32)
    bb2 = jnp.zeros((dim,), jnp.float32)
    m2 = jnp.zeros((dim,), jnp.float32)
    v2 = jnp.ones((dim,), jnp.float32)
    return (w3, b3, g1, bb1, m1, v1, w1, b1, g2, bb2, m2, v2)


if __name__ == "__main__":
    key = jax.random.PRNGKey(0)
    k_x2, k_x4, k_p = jax.random.split(key, 3)

    C, H, W = 4, 16, 16
    params = init_params(k_p, C)

    # N=2: two parallel grid steps (one image per step on the lane axis).
    x2 = jax.random.normal(k_x2, (2, C, H, W), jnp.float32)
    prep2 = prepare_params(params, x2.shape)          # hoisted one-time prep
    out2 = jax.block_until_ready(resblock_forward(x2, prep2))
    assert out2.shape == x2.shape and out2.dtype == jnp.float32
    ref2 = jax.block_until_ready(resblock_reference(x2, params))
    err2 = float(jnp.max(jnp.abs(out2 - ref2)))
    assert err2 < 5e-2, f"kernel/reference mismatch (N=2): max abs err {err2}"

    # N=4: two images folded onto the lane axis per grid step — exercises the
    # cross-image seam handling of the roll+mask halo.
    x4 = jax.random.normal(k_x4, (4, C, H, W), jnp.float32)
    prep4 = prepare_params(params, x4.shape)
    out4 = jax.block_until_ready(resblock_forward(x4, prep4))
    assert out4.shape == x4.shape and out4.dtype == jnp.float32
    ref4 = jax.block_until_ready(resblock_reference(x4, params))
    err4 = float(jnp.max(jnp.abs(out4 - ref4)))
    assert err4 < 5e-2, f"kernel/reference mismatch (N=4): max abs err {err4}"

    print("KERNEL_OK")
</pallas_src>

<mosaic_0001>
module attributes {stable_mosaic.version = 11 : i64} {
  func.func @_resblock_kernel(%arg0: i32, %arg1: memref<16x256xf32, #tpu.memory_space<vmem>>, %arg2: memref<9x16x256xbf16, #tpu.memory_space<vmem>>, %arg3: memref<16x144xbf16, #tpu.memory_space<vmem>>, %arg4: memref<16x16xbf16, #tpu.memory_space<vmem>>, %arg5: memref<16x1xf32, #tpu.memory_space<vmem>>, %arg6: memref<16x1xf32, #tpu.memory_space<vmem>>, %arg7: memref<16x256xf32, #tpu.memory_space<vmem>>) attributes {dimension_semantics = [#tpu.dimension_semantics<parallel>], iteration_bounds = array<i64: 2>, scalar_prefetch = 0 : i64, scratch_operands = 0 : i64, tpu.core_type = #tpu.core_type<tc>, window_params = [{transform_indices = @transform_0, window_bounds = array<i64: 16, 256>}, {pipeline_mode = #tpu.pipeline_mode<synchronous>, transform_indices = @transform_1, window_bounds = array<i64: 9, 16, 256>}, {pipeline_mode = #tpu.pipeline_mode<synchronous>, transform_indices = @transform_2, window_bounds = array<i64: 16, 144>}, {pipeline_mode = #tpu.pipeline_mode<synchronous>, transform_indices = @transform_3, window_bounds = array<i64: 16, 16>}, {pipeline_mode = #tpu.pipeline_mode<synchronous>, transform_indices = @transform_4, window_bounds = array<i64: 16, 1>}, {pipeline_mode = #tpu.pipeline_mode<synchronous>, transform_indices = @transform_5, window_bounds = array<i64: 16, 1>}, {transform_indices = @transform_6, window_bounds = array<i64: 16, 256>}]} {
    %c0 = arith.constant 0 : index
    %c0_0 = arith.constant 0 : index
    %0 = vector.load %arg1[%c0, %c0_0] : memref<16x256xf32, #tpu.memory_space<vmem>>, vector<16x256xf32>
    %cst = arith.constant 0.000000e+00 : f32
    %1 = vector.broadcast %cst : f32 to vector<16x256xf32>
    %2 = arith.maximumf %0, %1 : vector<16x256xf32>
    %c17_i32 = arith.constant 17 : i32
    %3 = tpu.dynamic_rotate %2 by %c17_i32 dim 1 : vector<16x256xf32>, i32 -> vector<16x256xf32>
    %4 = arith.truncf %3 : vector<16x256xf32> to vector<16x256xbf16>
    %c0_1 = arith.constant 0 : index
    %c0_2 = arith.constant 0 : index
    %c0_3 = arith.constant 0 : index
    %5 = vector.load %arg2[%c0_1, %c0_2, %c0_3] : memref<9x16x256xbf16, #tpu.memory_space<vmem>>, vector<1x16x256xbf16>
    %6 = vector.shape_cast %5 : vector<1x16x256xbf16> to vector<16x256xbf16>
    %7 = arith.mulf %4, %6 : vector<16x256xbf16>
    %c16_i32 = arith.constant 16 : i32
    %8 = tpu.dynamic_rotate %2 by %c16_i32 dim 1 : vector<16x256xf32>, i32 -> vector<16x256xf32>
    %9 = arith.truncf %8 : vector<16x256xf32> to vector<16x256xbf16>
    %c1 = arith.constant 1 : index
    %c0_4 = arith.constant 0 : index
    %c0_5 = arith.constant 0 : index
    %10 = vector.load %arg2[%c1, %c0_4, %c0_5] : memref<9x16x256xbf16, #tpu.memory_space<vmem>>, vector<1x16x256xbf16>
    %11 = vector.shape_cast %10 : vector<1x16x256xbf16> to vector<16x256xbf16>
    %12 = arith.mulf %9, %11 : vector<16x256xbf16>
    %c15_i32 = arith.constant 15 : i32
    %13 = tpu.dynamic_rotate %2 by %c15_i32 dim 1 : vector<16x256xf32>, i32 -> vector<16x256xf32>
    %14 = arith.truncf %13 : vector<16x256xf32> to vector<16x256xbf16>
    %c2 = arith.constant 2 : index
    %c0_6 = arith.constant 0 : index
    %c0_7 = arith.constant 0 : index
    %15 = vector.load %arg2[%c2, %c0_6, %c0_7] : memref<9x16x256xbf16, #tpu.memory_space<vmem>>, vector<1x16x256xbf16>
    %16 = vector.shape_cast %15 : vector<1x16x256xbf16> to vector<16x256xbf16>
    %17 = arith.mulf %14, %16 : vector<16x256xbf16>
    %c1_i32 = arith.constant 1 : i32
    %18 = tpu.dynamic_rotate %2 by %c1_i32 dim 1 : vector<16x256xf32>, i32 -> vector<16x256xf32>
    %19 = arith.truncf %18 : vector<16x256xf32> to vector<16x256xbf16>
    %c3 = arith.constant 3 : index
    %c0_8 = arith.constant 0 : index
    %c0_9 = arith.constant 0 : index
    %20 = vector.load %arg2[%c3, %c0_8, %c0_9] : memref<9x16x256xbf16, #tpu.memory_space<vmem>>, vector<1x16x256xbf16>
    %21 = vector.shape_cast %20 : vector<1x16x256xbf16> to vector<16x256xbf16>
    %22 = arith.mulf %19, %21 : vector<16x256xbf16>
    %23 = arith.truncf %2 : vector<16x256xf32> to vector<16x256xbf16>
    %c255_i32 = arith.constant 255 : i32
    %24 = tpu.dynamic_rotate %2 by %c255_i32 dim 1 : vector<16x256xf32>, i32 -> vector<16x256xf32>
    %25 = arith.truncf %24 : vector<16x256xf32> to vector<16x256xbf16>
    %c5 = arith.constant 5 : index
    %c0_10 = arith.constant 0 : index
    %c0_11 = arith.constant 0 : index
    %26 = vector.load %arg2[%c5, %c0_10, %c0_11] : memref<9x16x256xbf16, #tpu.memory_space<vmem>>, vector<1x16x256xbf16>
    %27 = vector.shape_cast %26 : vector<1x16x256xbf16> to vector<16x256xbf16>
    %28 = arith.mulf %25, %27 : vector<16x256xbf16>
    %c241_i32 = arith.constant 241 : i32
    %29 = tpu.dynamic_rotate %2 by %c241_i32 dim 1 : vector<16x256xf32>, i32 -> vector<16x256xf32>
    %30 = arith.truncf %29 : vector<16x256xf32> to vector<16x256xbf16>
    %c6 = arith.constant 6 : index
    %c0_12 = arith.constant 0 : index
    %c0_13 = arith.constant 0 : index
    %31 = vector.load %arg2[%c6, %c0_12, %c0_13] : memref<9x16x256xbf16, #tpu.memory_space<vmem>>, vector<1x16x256xbf16>
    %32 = vector.shape_cast %31 : vector<1x16x256xbf16> to vector<16x256xbf16>
    %33 = arith.mulf %30, %32 : vector<16x256xbf16>
    %c240_i32 = arith.constant 240 : i32
    %34 = tpu.dynamic_rotate %2 by %c240_i32 dim 1 : vector<16x256xf32>, i32 -> vector<16x256xf32>
    %35 = arith.truncf %34 : vector<16x256xf32> to vector<16x256xbf16>
    %c7 = arith.constant 7 : index
    %c0_14 = arith.constant 0 : index
    %c0_15 = arith.constant 0 : index
    %36 = vector.load %arg2[%c7, %c0_14, %c0_15] : memref<9x16x256xbf16, #tpu.memory_space<vmem>>, vector<1x16x256xbf16>
    %37 = vector.shape_cast %36 : vector<1x16x256xbf16> to vector<16x256xbf16>
    %38 = arith.mulf %35, %37 : vector<16x256xbf16>
    %c239_i32 = arith.constant 239 : i32
    %39 = tpu.dynamic_rotate %2 by %c239_i32 dim 1 : vector<16x256xf32>, i32 -> vector<16x256xf32>
    %40 = arith.truncf %39 : vector<16x256xf32> to vector<16x256xbf16>
    %c8 = arith.constant 8 : index
    %c0_16 = arith.constant 0 : index
    %c0_17 = arith.constant 0 : index
    %41 = vector.load %arg2[%c8, %c0_16, %c0_17] : memref<9x16x256xbf16, #tpu.memory_space<vmem>>, vector<1x16x256xbf16>
    %42 = vector.shape_cast %41 : vector<1x16x256xbf16> to vector<16x256xbf16>
    %43 = arith.mulf %40, %42 : vector<16x256xbf16>
    %44 = tpu.concatenate %7, %12, %17, %22, %23, %28, %33, %38, %43 in 0 : vector<16x256xbf16>, vector<16x256xbf16>, vector<16x256xbf16>, vector<16x256xbf16>, vector<16x256xbf16>, vector<16x256xbf16>, vector<16x256xbf16>, vector<16x256xbf16>, vector<16x256xbf16> -> vector<144x256xbf16>
    %c0_18 = arith.constant 0 : index
    %c0_19 = arith.constant 0 : index
    %45 = vector.load %arg3[%c0_18, %c0_19] : memref<16x144xbf16, #tpu.memory_space<vmem>>, vector<16x144xbf16>
    %cst_20 = arith.constant dense<0.000000e+00> : vector<16x256xf32>
    %46 = tpu.matmul %45, %44, %cst_20 {dimension_numbers = #tpu.dot_dimension_numbers<[1], [0], [0], [1], [0, 0, 1, 1], [], []>} : vector<16x144xbf16>, vector<144x256xbf16>, vector<16x256xf32> -> vector<16x256xf32>
    %c0_21 = arith.constant 0 : index
    %c0_22 = arith.constant 0 : index
    %47 = vector.load %arg5[%c0_21, %c0_22] : memref<16x1xf32, #tpu.memory_space<vmem>>, vector<16x1xf32>
    %48 = vector.broadcast %47 : vector<16x1xf32> to vector<16x256xf32>
    %49 = arith.addf %46, %48 : vector<16x256xf32>
    %cst_23 = arith.constant 0.000000e+00 : f32
    %50 = vector.broadcast %cst_23 : f32 to vector<16x256xf32>
    %51 = arith.maximumf %49, %50 : vector<16x256xf32>
    %c0_24 = arith.constant 0 : index
    %c0_25 = arith.constant 0 : index
    %52 = vector.load %arg4[%c0_24, %c0_25] : memref<16x16xbf16, #tpu.memory_space<vmem>>, vector<16x16xbf16>
    %53 = arith.truncf %51 : vector<16x256xf32> to vector<16x256xbf16>
    %cst_26 = arith.constant dense<0.000000e+00> : vector<16x256xf32>
    %54 = tpu.matmul %52, %53, %cst_26 {dimension_numbers = #tpu.dot_dimension_numbers<[1], [0], [0], [1], [0, 0, 1, 1], [], []>} : vector<16x16xbf16>, vector<16x256xbf16>, vector<16x256xf32> -> vector<16x256xf32>
    %55 = arith.addf %0, %54 : vector<16x256xf32>
    %c0_27 = arith.constant 0 : index
    %c0_28 = arith.constant 0 : index
    %56 = vector.load %arg6[%c0_27, %c0_28] : memref<16x1xf32, #tpu.memory_space<vmem>>, vector<16x1xf32>
    %57 = vector.broadcast %56 : vector<16x1xf32> to vector<16x256xf32>
    %58 = arith.addf %55, %57 : vector<16x256xf32>
    %c0_29 = arith.constant 0 : index
    %c0_30 = arith.constant 0 : index
    %59 = vector.load %arg7[%c0_29, %c0_30] : memref<16x256xf32, #tpu.memory_space<vmem>>, vector<16x256xf32>
    tpu.vector_store %arg7[%c0_29, %c0_30], %58 {strides = array<i32>} : memref<16x256xf32, #tpu.memory_space<vmem>>, vector<16x256xf32>,
    return
  }
  func.func @transform_0(%arg0: i32) -> (i32, i32) {
    %c0_i32 = arith.constant 0 : i32
    %c0_i32_0 = arith.constant 0 : i32
    return %c0_i32, %arg0 : i32, i32
  }
  func.func @transform_1(%arg0: i32) -> (i32, i32, i32) {
    %c0_i32 = arith.constant 0 : i32
    %c0_i32_0 = arith.constant 0 : i32
    %c0_i32_1 = arith.constant 0 : i32
    %c0_i32_2 = arith.constant 0 : i32
    return %c0_i32, %c0_i32_0, %c0_i32_1 : i32, i32, i32
  }
  func.func @transform_2(%arg0: i32) -> (i32, i32) {
    %c0_i32 = arith.constant 0 : i32
    %c0_i32_0 = arith.constant 0 : i32
    %c0_i32_1 = arith.constant 0 : i32
    return %c0_i32, %c0_i32_0 : i32, i32
  }
  func.func @transform_3(%arg0: i32) -> (i32, i32) {
    %c0_i32 = arith.constant 0 : i32
    %c0_i32_0 = arith.constant 0 : i32
    %c0_i32_1 = arith.constant 0 : i32
    return %c0_i32, %c0_i32_0 : i32, i32
  }
  func.func @transform_4(%arg0: i32) -> (i32, i32) {
    %c0_i32 = arith.constant 0 : i32
    %c0_i32_0 = arith.constant 0 : i32
    %c0_i32_1 = arith.constant 0 : i32
    return %c0_i32, %c0_i32_0 : i32, i32
  }
  func.func @transform_5(%arg0: i32) -> (i32, i32) {
    %c0_i32 = arith.constant 0 : i32
    %c0_i32_0 = arith.constant 0 : i32
    %c0_i32_1 = arith.constant 0 : i32
    return %c0_i32, %c0_i32_0 : i32, i32
  }
  func.func @transform_6(%arg0: i32) -> (i32, i32) {
    %c0_i32 = arith.constant 0 : i32
    %c0_i32_0 = arith.constant 0 : i32
    return %c0_i32, %arg0 : i32, i32
  }
}

</mosaic_0001>

<llo_original>
// kernel: resblock_forward.1
$region0: #{resblock_forward.1}
  #allocation0 [shape = 'u32[]', space=smem, size = 0x4, offset = 0x4, fixed_abs, tag = 'smem constant byte address 0x4 - core index']
  #allocation1 [shape = 'u32[144,128]{1,0:T(1,128)}', space=vmem, size = 0x12000, scoped, tag = 'internal scratch']
  %s0 = inlined_call_operand.vmem [shape: f32[16,512], index: 0, kind: input, shape index: {}]
  %s1 = inlined_call_operand.vmem [shape: bf16[9,16,256], index: 1, kind: input, shape index: {}]
  %s2 = inlined_call_operand.vmem [shape: bf16[16,144], index: 2, kind: input, shape index: {}]
  %s3 = inlined_call_operand.vmem [shape: bf16[16,16], index: 3, kind: input, shape index: {}]
  %s4 = inlined_call_operand.vmem [shape: f32[16,1], index: 4, kind: input, shape index: {}]
  %s5 = inlined_call_operand.vmem [shape: f32[16,1], index: 5, kind: input, shape index: {}]
  %s6 = inlined_call_operand.vmem [shape: f32[16,512], index: 6, kind: output, shape index: {}]
  %s7 = sld [smem:[#allocation0]]
  $region99: #{resblock_forward.1} parent=0
    _
  %s9 = ssub.s32 1, %s7
  %s10 = scalar_select 0, %s9, %s7
  $region1: #{resblock_forward.1} parent=0
    #allocation2 [shape = 'u8[32768]{0}', space=vmem, size = 0x8000, scoped, tag = 'input window, operand 0']
    #allocation3 [shape = 'u8[32768]{0}', space=vmem, size = 0x8000, scoped, tag = 'output window, operand 0']
    loop: start=0, step=1, limit=4
    $region2: #{resblock_forward.1} parent=1 // loop_pre_header
      _
    $region3: #{resblock_forward.1} parent=1 // loop_header
      %s12 = sphi 0, %s16
      %p13 = scmp.ge.s32.totalorder %s12, 4
      %s22 = sphi 0, %s24
      %s25 = sphi 0, %s22
      %s26 = sphi 0, %s25
      %s42 = sphi 0, %s26
      %s46 = sphi 0, %s46
      %s48 = sphi 0, %s46
      %s49 = sphi 0, %s48
      %s63 = sphi 0, %s49
      %s67 = sphi 0, %s67
      %s69 = sphi 0, %s67
      %s70 = sphi 0, %s69
      %s84 = sphi 0, %s70
      %s88 = sphi 0, %s88
      %s90 = sphi 0, %s88
      %s91 = sphi 0, %s90
      %s105 = sphi 0, %s91
      %s109 = sphi 0, %s109
      %s111 = sphi 0, %s109
      %s112 = sphi 0, %s111
      %s126 = sphi 0, %s112
      %s130 = sphi 0, %s130
      %s132 = sphi 0, %s130
      %s133 = sphi 0, %s132
      %s147 = sphi 0, %s133
      %s153 = sphi 0, %s155
      %s156 = sphi 0, %s153
      %s157 = sphi 0, %s156
      %s173 = sphi 0, %s157
    $region4: #{resblock_forward.1} parent=1 // loop_header_branch
      %15 = sbr.rel (%p13) target = $region8
    $region5: #{resblock_forward.1} parent=1 // loop_body
      %s17 = ssub.s32 %s12, 1
      %s18 = ssub.s32 %s12, 2
      %s19 = sadd.s32 %s12, 1
      %s20 = ssub.s32 %s12, %s19
      %p21 = scmp.eq.s32.totalorder %s20, 0
      %s23 = sadd.s32 %s22, 1
      %s24 = scalar_select %p21, %s22, %s23
      %p27 = pneg %p21
      %p28 = scmp.eq.s32.totalorder %s12, 1
      %p29 = por %p27, %p28
      %p30 = scmp.ne.s32.totalorder %s22, %s25
      %p31 = scmp.eq.s32.totalorder %s12, 0
      %p32 = por %p30, %p31
      %p33 = scmp.ne.s32.totalorder %s22, %s25
      %p34 = scmp.eq.s32.totalorder %s17, 1
      %p35 = por %p33, %p34
      %p36 = scmp.ne.s32.totalorder %s25, %s26
      %p37 = scmp.eq.s32.totalorder %s17, 0
      %p38 = por %p36, %p37
      %p39 = scmp.ne.s32.totalorder %s25, %s26
      %p40 = scmp.eq.s32.totalorder %s18, 1
      %p41 = por %p39, %p40
      %p43 = scmp.ne.s32.totalorder %s26, %s42
      %p44 = scmp.eq.s32.totalorder %s18, 0
      %p45 = por %p43, %p44
      %s47 = sadd.s32 %s46, 1
      %p50 = scmp.eq.s32.totalorder %s12, 1
      %p51 = scmp.ne.s32.totalorder %s46, %s48
      %p52 = scmp.eq.s32.totalorder %s12, 0
      %p53 = por %p51, %p52
      %p54 = scmp.ne.s32.totalorder %s46, %s48
      %p55 = scmp.eq.s32.totalorder %s17, 1
      %p56 = por %p54, %p55
      %p57 = scmp.ne.s32.totalorder %s48, %s49
      %p58 = scmp.eq.s32.totalorder %s17, 0
      %p59 = por %p57, %p58
      %p60 = scmp.ne.s32.totalorder %s48, %s49
      %p61 = scmp.eq.s32.totalorder %s18, 1
      %p62 = por %p60, %p61
      %p64 = scmp.ne.s32.totalorder %s49, %s63
      %p65 = scmp.eq.s32.totalorder %s18, 0
      %p66 = por %p64, %p65
      %s68 = sadd.s32 %s67, 1
      %p71 = scmp.eq.s32.totalorder %s12, 1
      %p72 = scmp.ne.s32.totalorder %s67, %s69
      %p73 = scmp.eq.s32.totalorder %s12, 0
      %p74 = por %p72, %p73
      %p75 = scmp.ne.s32.totalorder %s67, %s69
      %p76 = scmp.eq.s32.totalorder %s17, 1
      %p77 = por %p75, %p76
      %p78 = scmp.ne.s32.totalorder %s69, %s70
      %p79 = scmp.eq.s32.totalorder %s17, 0
      %p80 = por %p78, %p79
      %p81 = scmp.ne.s32.totalorder %s69, %s70
      %p82 = scmp.eq.s32.totalorder %s18, 1
      %p83 = por %p81, %p82
      %p85 = scmp.ne.s32.totalorder %s70, %s84
      %p86 = scmp.eq.s32.totalorder %s18, 0
      %p87 = por %p85, %p86
      %s89 = sadd.s32 %s88, 1
      %p92 = scmp.eq.s32.totalorder %s12, 1
      %p93 = scmp.ne.s32.totalorder %s88, %s90
      %p94 = scmp.eq.s32.totalorder %s12, 0
      %p95 = por %p93, %p94
      %p96 = scmp.ne.s32.totalorder %s88, %s90
      %p97 = scmp.eq.s32.totalorder %s17, 1
      %p98 = por %p96, %p97
      %p99 = scmp.ne.s32.totalorder %s90, %s91
      %p100 = scmp.eq.s32.totalorder %s17, 0
      %p101 = por %p99, %p100
      %p102 = scmp.ne.s32.totalorder %s90, %s91
      %p103 = scmp.eq.s32.totalorder %s18, 1
      %p104 = por %p102, %p103
      %p106 = scmp.ne.s32.totalorder %s91, %s105
      %p107 = scmp.eq.s32.totalorder %s18, 0
      %p108 = por %p106, %p107
      %s110 = sadd.s32 %s109, 1
      %p113 = scmp.eq.s32.totalorder %s12, 1
      %p114 = scmp.ne.s32.totalorder %s109, %s111
      %p115 = scmp.eq.s32.totalorder %s12, 0
      %p116 = por %p114, %p115
      %p117 = scmp.ne.s32.totalorder %s109, %s111
      %p118 = scmp.eq.s32.totalorder %s17, 1
      %p119 = por %p117, %p118
      %p120 = scmp.ne.s32.totalorder %s111, %s112
      %p121 = scmp.eq.s32.totalorder %s17, 0
      %p122 = por %p120, %p121
      %p123 = scmp.ne.s32.totalorder %s111, %s112
      %p124 = scmp.eq.s32.totalorder %s18, 1
      %p125 = por %p123, %p124
      %p127 = scmp.ne.s32.totalorder %s112, %s126
      %p128 = scmp.eq.s32.totalorder %s18, 0
      %p129 = por %p127, %p128
      %s131 = sadd.s32 %s130, 1
      %p134 = scmp.eq.s32.totalorder %s12, 1
      %p135 = scmp.ne.s32.totalorder %s130, %s132
      %p136 = scmp.eq.s32.totalorder %s12, 0
      %p137 = por %p135, %p136
      %p138 = scmp.ne.s32.totalorder %s130, %s132
      %p139 = scmp.eq.s32.totalorder %s17, 1
      %p140 = por %p138, %p139
      %p141 = scmp.ne.s32.totalorder %s132, %s133
      %p142 = scmp.eq.s32.totalorder %s17, 0
      %p143 = por %p141, %p142
      %p144 = scmp.ne.s32.totalorder %s132, %s133
      %p145 = scmp.eq.s32.totalorder %s18, 1
      %p146 = por %p144, %p145
      %p148 = scmp.ne.s32.totalorder %s133, %s147
      %p149 = scmp.eq.s32.totalorder %s18, 0
      %p150 = por %p148, %p149
      %s151 = ssub.s32 %s12, %s19
      %p152 = scmp.eq.s32.totalorder %s151, 0
      %s154 = sadd.s32 %s153, 1
      %s155 = scalar_select %p152, %s153, %s154
      %p158 = pneg %p152
      %p159 = scmp.eq.s32.totalorder %s12, 1
      %p160 = por %p158, %p159
      %p161 = scmp.ne.s32.totalorder %s153, %s156
      %p162 = scmp.eq.s32.totalorder %s12, 0
      %p163 = por %p161, %p162
      %p164 = scmp.ne.s32.totalorder %s153, %s156
      %p165 = scmp.eq.s32.totalorder %s17, 1
      %p166 = por %p164, %p165
      %p167 = scmp.ne.s32.totalorder %s156, %s157
      %p168 = scmp.eq.s32.totalorder %s17, 0
      %p169 = por %p167, %p168
      %p170 = scmp.ne.s32.totalorder %s156, %s157
      %p171 = scmp.eq.s32.totalorder %s18, 1
      %p172 = por %p170, %p171
      %p174 = scmp.ne.s32.totalorder %s157, %s173
      %p175 = scmp.eq.s32.totalorder %s18, 0
      %p176 = por %p174, %p175
      %p177 = scmp.le.s32.totalorder 1, %s12
      %p178 = scmp.lt.s32.totalorder %s12, 3
      %p179 = pnand %p177, %p178
      %p180 = pneg %p179
      // Predicated region
      $region9: #{resblock_forward.1} parent=5 // pred_check
        _
      $region10: #{resblock_forward.1} parent=5 // pred_check_branch
        %182 = sbr.rel (%p179) target = $region12
      $region11: #{resblock_forward.1} parent=5 // pred_region
        %s183 = ssub.s32 %s12, 1
        // Predicated region
        $region13: #{resblock_forward.1} parent=11 // pred_check
          %p184 = pneg %p59
        $region14: #{resblock_forward.1} parent=11 // pred_check_branch
          %186 = sbr.rel (%p184) target = $region16
        $region15: #{resblock_forward.1} parent=11 // pred_region
          _
        $region16: #{resblock_forward.1} parent=11 // pred_fallthru
          _
        // Predicated region
        $region17: #{resblock_forward.1} parent=11 // pred_check
          %p187 = pneg %p80
        $region18: #{resblock_forward.1} parent=11 // pred_check_branch
          %189 = sbr.rel (%p187) target = $region20
        $region19: #{resblock_forward.1} parent=11 // pred_region
          _
        $region20: #{resblock_forward.1} parent=11 // pred_fallthru
          _
        // Predicated region
        $region21: #{resblock_forward.1} parent=11 // pred_check
          %p190 = pneg %p101
        $region22: #{resblock_forward.1} parent=11 // pred_check_branch
          %192 = sbr.rel (%p190) target = $region24
        $region23: #{resblock_forward.1} parent=11 // pred_region
          _
        $region24: #{resblock_forward.1} parent=11 // pred_fallthru
          _
        // Predicated region
        $region25: #{resblock_forward.1} parent=11 // pred_check
          %p193 = pneg %p122
        $region26: #{resblock_forward.1} parent=11 // pred_check_branch
          %195 = sbr.rel (%p193) target = $region28
        $region27: #{resblock_forward.1} parent=11 // pred_region
          _
        $region28: #{resblock_forward.1} parent=11 // pred_fallthru
          _
        // Predicated region
        $region29: #{resblock_forward.1} parent=11 // pred_check
          %p196 = pneg %p143
        $region30: #{resblock_forward.1} parent=11 // pred_check_branch
          %198 = sbr.rel (%p196) target = $region32
        $region31: #{resblock_forward.1} parent=11 // pred_region
          _
        $region32: #{resblock_forward.1} parent=11 // pred_fallthru
          _
      $region12: #{resblock_forward.1} parent=5 // pred_fallthru
        _
      %p199 = scmp.lt.s32.totalorder %s12, 2
      // Predicated region
      $region33: #{resblock_forward.1} parent=5 // pred_check
        %p200 = pneg %p199
      $region34: #{resblock_forward.1} parent=5 // pred_check_branch
        %202 = sbr.rel (%p200) target = $region36
      $region35: #{resblock_forward.1} parent=5 // pred_region
        // Predicated region
        $region37: #{resblock_forward.1} parent=35 // pred_check
          %p203 = pneg %p32
        $region38: #{resblock_forward.1} parent=35 // pred_check_branch
          %205 = sbr.rel (%p203) target = $region40
        $region39: #{resblock_forward.1} parent=35 // pred_region
          %s206 = sand.u32 %s22, 1
          %s207 = sand.u32 %s22, 1
          %s208 = smul.addr %s207, 32
          %s209 = scalar_lea.vmem [#allocation2], %s208
          %s210 = smul.u32 2, %s12
          %s211 = smul.addr %s210, 8
          %s212 = scalar_lea.vmem %s0, %s211
          // Predicated region
          $region41: #{resblock_forward.1} parent=39 // pred_check
            _
          $region42: #{resblock_forward.1} parent=39 // pred_check_branch
            %214 = sbr.rel (0) target = $region44
          $region43: #{resblock_forward.1} parent=39 // pred_region
            // Predicated region
            $region45: #{resblock_forward.1} parent=43 // pred_check
              _
            $region46: #{resblock_forward.1} parent=43 // pred_check_branch
              %216 = sbr.rel (0) target = $region48
            $region47: #{resblock_forward.1} parent=43 // pred_region
              loop: start=0, step=1, limit=1
              $region49: #{resblock_forward.1} parent=47 // loop_pre_header
                _
              $region50: #{resblock_forward.1} parent=47 // loop_header
                %s218 = sphi 0, %s222
                %p219 = scmp.ge.s32.totalorder %s218, 1
                %s223 = sphi %s212, %s212
                %s224 = sphi %s209, %s209
              $region51: #{resblock_forward.1} parent=47 // loop_header_branch
                %221 = sbr.rel (%p219) target = $region55
              $region52: #{resblock_forward.1} parent=47 // loop_body
                %v225 = vld [vmem:[%s223] sm:$0xff]
                %226 = vst [vmem:[%s224] sm:$0xff] %v225
                %v227 = vld [vmem:[%s223 + $0x8] sm:$0xff]
                %228 = vst [vmem:[%s224 + $0x8] sm:$0xff] %v227
                %v229 = vld [vmem:[%s223 + $0x20] sm:$0xff]
                %230 = vst [vmem:[%s224 + $0x10] sm:$0xff] %v229
                %v231 = vld [vmem:[%s223 + $0x28] sm:$0xff]
                %232 = vst [vmem:[%s224 + $0x18] sm:$0xff] %v231
              $region53: #{resblock_forward.1} parent=47 // loop_footer
                %s222 = sadd.s32 1, %s218
              $region54: #{resblock_forward.1} parent=47 // loop_footer_branch
                %217 = sbr.rel target = $region50
              $region55: #{resblock_forward.1} parent=47 // loop_exit
                _
            $region48: #{resblock_forward.1} parent=43 // pred_fallthru
              _
            // Predicated region
            $region56: #{resblock_forward.1} parent=43 // pred_check
              _
            $region57: #{resblock_forward.1} parent=43 // pred_check_branch
              %234 = sbr.rel target = $region59
            $region58: #{resblock_forward.1} parent=43 // pred_region
              _
            $region59: #{resblock_forward.1} parent=43 // pred_fallthru
              _
          $region44: #{resblock_forward.1} parent=39 // pred_fallthru
            _
          %235 = vnop
        $region40: #{resblock_forward.1} parent=35 // pred_fallthru
          _
      $region36: #{resblock_forward.1} parent=5 // pred_fallthru
        _
      %p236 = scmp.le.s32.totalorder 1, %s12
      %p237 = scmp.lt.s32.totalorder %s12, 3
      %p238 = pnand %p236, %p237
      %p239 = pneg %p238
      // Predicated region
      $region60: #{resblock_forward.1} parent=5 // pred_check
        _
      $region61: #{resblock_forward.1} parent=5 // pred_check_branch
        %241 = sbr.rel (%p238) target = $region63
      $region62: #{resblock_forward.1} parent=5 // pred_region
        %s242 = ssub.s32 %s12, 1
        %s243 = sand.u32 %s25, 1
        %s244 = sand.u32 %s25, 1
        %s245 = smul.addr %s244, 32
        %s246 = scalar_lea.vmem [#allocation2], %s245
        // Predicated region
        $region64: #{resblock_forward.1} parent=62 // pred_check
          %p247 = pneg %p38
        $region65: #{resblock_forward.1} parent=62 // pred_check_branch
          %249 = sbr.rel (%p247) target = $region67
        $region66: #{resblock_forward.1} parent=62 // pred_region
          _
        $region67: #{resblock_forward.1} parent=62 // pred_fallthru
          _
        %s250 = sand.u32 %s25, 1
        %s251 = sand.u32 %s25, 1
        %s252 = smul.addr %s251, 32
        %s253 = scalar_lea.vmem [#allocation2], %s252
        %p254 = pneg %p38
        %p255 = pneg %p35
        %p256 = pneg %p59
        %p257 = pneg %p56
        %p258 = pneg %p80
        %p259 = pneg %p77
        %p260 = pneg %p101
        %p261 = pneg %p98
        %p262 = pneg %p122
        %p263 = pneg %p119
        %p264 = pneg %p143
        %p265 = pneg %p140
        %p266 = pneg %p169
        %p267 = pneg %p166
        %s268 = sand.u32 %s156, 1
        %s269 = sand.u32 %s156, 1
        %s270 = smul.addr %s269, 32
        %s271 = scalar_lea.vmem [#allocation3], %s270
        %s272 = smul.u32 2, %s17
        %s273 = smul.u32 2, %s17
        %v275 = vld [vmem:[%s246] sm:$0xff]
        %v276 = vld [vmem:[%s246 + $0x8] sm:$0xff]
        %v277 = vld [vmem:[%s246 + $0x10] sm:$0xff]
        %v278 = vld [vmem:[%s246 + $0x18] sm:$0xff]
        %v279 = vmax.f32 %v275, 0.0
        %v280 = vmax.f32 %v276, 0.0
        %v281 = vmax.f32 %v277, 0.0
        %v282 = vmax.f32 %v278, 0.0
        %283 = vrot.lane.b32.xlu0 %v279, 17
        %v284 = vpop.permute.xlu0 %283
        %285 = vrot.lane.b32.xlu0 %v281, 17
        %v286 = vpop.permute.xlu0 %285
        %287 = vrot.lane.b32.xlu0 %v280, 17
        %v288 = vpop.permute.xlu0 %287
        %289 = vrot.lane.b32.xlu0 %v282, 17
        %v290 = vpop.permute.xlu0 %289
        %v291 = vlaneseq
        %v292 = vand.u32 %v291, 127
        %vm293 = vcmp.lt.s32.totalorder %v292, 17
        %v294 = vsel %vm293, %v284, %v288
        %v295 = vsel %vm293, %v286, %v290
        %v296 = vsel %vm293, %v288, %v284
        %v297 = vsel %vm293, %v290, %v286
        %v298 = vpack.c.bf16 %v297, %v296
        %v299 = vpack.c.bf16 %v295, %v294
        %v300 = vld [vmem:[%s1] sm:$0xff]
        %v301 = vld [vmem:[%s1 + $0x8] sm:$0xff]
        %v304 = vunpack.c.l.b16 %v300
        %v305 = vunpack.c.h.b16 %v300
        %v306 = vunpack.c.l.b16 %v301
        %v307 = vunpack.c.h.b16 %v301
        %v308 = vpack.c.b16 %v306, %v304
        %v309 = vpack.c.b16 %v307, %v305
        %v312 = vmul.bf16 %v298, %v308
        %v313 = vmul.bf16 %v299, %v309
        %314 = vrot.lane.b32.xlu0 %v279, 16
        %v315 = vpop.permute.xlu0 %314
        %316 = vrot.lane.b32.xlu0 %v281, 16
        %v317 = vpop.permute.xlu0 %316
        %318 = vrot.lane.b32.xlu0 %v280, 16
        %v319 = vpop.permute.xlu0 %318
        %320 = vrot.lane.b32.xlu0 %v282, 16
        %v321 = vpop.permute.xlu0 %320
        %vm322 = vcmp.lt.s32.totalorder %v292, 16
        %v323 = vsel %vm322, %v315, %v319
        %v324 = vsel %vm322, %v317, %v321
        %v325 = vsel %vm322, %v319, %v315
        %v326 = vsel %vm322, %v321, %v317
        %v327 = vpack.c.bf16 %v326, %v325
        %v328 = vpack.c.bf16 %v324, %v323
        %s329 = scalar_lea.vmem %s1, 16
        %v330 = vld [vmem:[%s329] sm:$0xff]
        %v331 = vld [vmem:[%s329 + $0x8] sm:$0xff]
        %v334 = vunpack.c.l.b16 %v330
        %v335 = vunpack.c.h.b16 %v330
        %v336 = vunpack.c.l.b16 %v331
        %v337 = vunpack.c.h.b16 %v331
        %v338 = vpack.c.b16 %v336, %v334
        %v339 = vpack.c.b16 %v337, %v335
        %v342 = vmul.bf16 %v327, %v338
        %v343 = vmul.bf16 %v328, %v339
        %344 = vrot.lane.b32.xlu0 %v279, 15
        %v345 = vpop.permute.xlu0 %344
        %346 = vrot.lane.b32.xlu0 %v281, 15
        %v347 = vpop.permute.xlu0 %346
        %348 = vrot.lane.b32.xlu0 %v280, 15
        %v349 = vpop.permute.xlu0 %348
        %350 = vrot.lane.b32.xlu0 %v282, 15
        %v351 = vpop.permute.xlu0 %350
        %vm352 = vcmp.lt.s32.totalorder %v292, 15
        %v353 = vsel %vm352, %v345, %v349
        %v354 = vsel %vm352, %v347, %v351
        %v355 = vsel %vm352, %v349, %v345
        %v356 = vsel %vm352, %v351, %v347
        %v357 = vpack.c.bf16 %v356, %v355
        %v358 = vpack.c.bf16 %v354, %v353
        %s359 = scalar_lea.vmem %s1, 32
        %v360 = vld [vmem:[%s359] sm:$0xff]
        %v361 = vld [vmem:[%s359 + $0x8] sm:$0xff]
        %v364 = vunpack.c.l.b16 %v360
        %v365 = vunpack.c.h.b16 %v360
        %v366 = vunpack.c.l.b16 %v361
        %v367 = vunpack.c.h.b16 %v361
        %v368 = vpack.c.b16 %v366, %v364
        %v369 = vpack.c.b16 %v367, %v365
        %v372 = vmul.bf16 %v357, %v368
        %v373 = vmul.bf16 %v358, %v369
        %374 = vrot.lane.b32.xlu0 %v279, 1
        %v375 = vpop.permute.xlu0 %374
        %376 = vrot.lane.b32.xlu0 %v281, 1
        %v377 = vpop.permute.xlu0 %376
        %378 = vrot.lane.b32.xlu0 %v280, 1
        %v379 = vpop.permute.xlu0 %378
        %380 = vrot.lane.b32.xlu0 %v282, 1
        %v381 = vpop.permute.xlu0 %380
        %vm382 = vcmp.lt.s32.totalorder %v292, 1
        %v383 = vsel %vm382, %v375, %v379
        %v384 = vsel %vm382, %v377, %v381
        %v385 = vsel %vm382, %v379, %v375
        %v386 = vsel %vm382, %v381, %v377
        %v387 = vpack.c.bf16 %v386, %v385
        %v388 = vpack.c.bf16 %v384, %v383
        %s389 = scalar_lea.vmem %s1, 48
        %v390 = vld [vmem:[%s389] sm:$0xff]
        %v391 = vld [vmem:[%s389 + $0x8] sm:$0xff]
        %v394 = vunpack.c.l.b16 %v390
        %v395 = vunpack.c.h.b16 %v390
        %v396 = vunpack.c.l.b16 %v391
        %v397 = vunpack.c.h.b16 %v391
        %v398 = vpack.c.b16 %v396, %v394
        %v399 = vpack.c.b16 %v397, %v395
        %v402 = vmul.bf16 %v387, %v398
        %v403 = vmul.bf16 %v388, %v399
        %v404 = vpack.c.bf16 %v281, %v279
        %v405 = vpack.c.bf16 %v282, %v280
        %406 = vrot.lane.b32.xlu0 %v279, 127
        %v407 = vpop.permute.xlu0 %406
        %408 = vrot.lane.b32.xlu0 %v281, 127
        %v409 = vpop.permute.xlu0 %408
        %410 = vrot.lane.b32.xlu0 %v280, 127
        %v411 = vpop.permute.xlu0 %410
        %412 = vrot.lane.b32.xlu0 %v282, 127
        %v413 = vpop.permute.xlu0 %412
        %vm414 = vcmp.lt.s32.totalorder %v292, 127
        %v415 = vsel %vm414, %v407, %v411
        %v416 = vsel %vm414, %v409, %v413
        %v417 = vsel %vm414, %v411, %v407
        %v418 = vsel %vm414, %v413, %v409
        %v419 = vpack.c.bf16 %v416, %v415
        %v420 = vpack.c.bf16 %v418, %v417
        %s421 = scalar_lea.vmem %s1, 80
        %v422 = vld [vmem:[%s421] sm:$0xff]
        %v423 = vld [vmem:[%s421 + $0x8] sm:$0xff]
        %v426 = vunpack.c.l.b16 %v422
        %v427 = vunpack.c.h.b16 %v422
        %v428 = vunpack.c.l.b16 %v423
        %v429 = vunpack.c.h.b16 %v423
        %v430 = vpack.c.b16 %v428, %v426
        %v431 = vpack.c.b16 %v429, %v427
        %v434 = vmul.bf16 %v419, %v430
        %v435 = vmul.bf16 %v420, %v431
        %436 = vrot.lane.b32.xlu0 %v279, 113
        %v437 = vpop.permute.xlu0 %436
        %438 = vrot.lane.b32.xlu0 %v281, 113
        %v439 = vpop.permute.xlu0 %438
        %440 = vrot.lane.b32.xlu0 %v280, 113
        %v441 = vpop.permute.xlu0 %440
        %442 = vrot.lane.b32.xlu0 %v282, 113
        %v443 = vpop.permute.xlu0 %442
        %vm444 = vcmp.lt.s32.totalorder %v292, 113
        %v445 = vsel %vm444, %v437, %v441
        %v446 = vsel %vm444, %v439, %v443
        %v447 = vsel %vm444, %v441, %v437
        %v448 = vsel %vm444, %v443, %v439
        %v449 = vpack.c.bf16 %v446, %v445
        %v450 = vpack.c.bf16 %v448, %v447
        %s451 = scalar_lea.vmem %s1, 96
        %v452 = vld [vmem:[%s451] sm:$0xff]
        %v453 = vld [vmem:[%s451 + $0x8] sm:$0xff]
        %v456 = vunpack.c.l.b16 %v452
        %v457 = vunpack.c.h.b16 %v452
        %v458 = vunpack.c.l.b16 %v453
        %v459 = vunpack.c.h.b16 %v453
        %v460 = vpack.c.b16 %v458, %v456
        %v461 = vpack.c.b16 %v459, %v457
        %v464 = vmul.bf16 %v449, %v460
        %v465 = vmul.bf16 %v450, %v461
        %466 = vrot.lane.b32.xlu0 %v279, 112
        %v467 = vpop.permute.xlu0 %466
        %468 = vrot.lane.b32.xlu0 %v281, 112
        %v469 = vpop.permute.xlu0 %468
        %470 = vrot.lane.b32.xlu0 %v280, 112
        %v471 = vpop.permute.xlu0 %470
        %472 = vrot.lane.b32.xlu0 %v282, 112
        %v473 = vpop.permute.xlu0 %472
        %vm474 = vcmp.lt.s32.totalorder %v292, 112
        %v475 = vsel %vm474, %v467, %v471
        %v476 = vsel %vm474, %v469, %v473
        %v477 = vsel %vm474, %v471, %v467
        %v478 = vsel %vm474, %v473, %v469
        %v479 = vpack.c.bf16 %v476, %v475
        %v480 = vpack.c.bf16 %v478, %v477
        %s481 = scalar_lea.vmem %s1, 112
        %v482 = vld [vmem:[%s481] sm:$0xff]
        %v483 = vld [vmem:[%s481 + $0x8] sm:$0xff]
        %v486 = vunpack.c.l.b16 %v482
        %v487 = vunpack.c.h.b16 %v482
        %v488 = vunpack.c.l.b16 %v483
        %v489 = vunpack.c.h.b16 %v483
        %v490 = vpack.c.b16 %v488, %v486
        %v491 = vpack.c.b16 %v489, %v487
        %v494 = vmul.bf16 %v479, %v490
        %v495 = vmul.bf16 %v480, %v491
        %496 = vrot.lane.b32.xlu0 %v279, 111
        %v497 = vpop.permute.xlu0 %496
        %498 = vrot.lane.b32.xlu0 %v281, 111
        %v499 = vpop.permute.xlu0 %498
        %500 = vrot.lane.b32.xlu0 %v280, 111
        %v501 = vpop.permute.xlu0 %500
        %502 = vrot.lane.b32.xlu0 %v282, 111
        %v503 = vpop.permute.xlu0 %502
        %vm504 = vcmp.lt.s32.totalorder %v292, 111
        %v505 = vsel %vm504, %v497, %v501
        %v506 = vsel %vm504, %v499, %v503
        %v507 = vsel %vm504, %v501, %v497
        %v508 = vsel %vm504, %v503, %v499
        %v509 = vpack.c.bf16 %v506, %v505
        %v510 = vpack.c.bf16 %v508, %v507
        %s511 = scalar_lea.vmem %s1, 128
        %v512 = vld [vmem:[%s511] sm:$0xff]
        %v513 = vld [vmem:[%s511 + $0x8] sm:$0xff]
        %v516 = vunpack.c.l.b16 %v512
        %v517 = vunpack.c.h.b16 %v512
        %v518 = vunpack.c.l.b16 %v513
        %v519 = vunpack.c.h.b16 %v513
        %v520 = vpack.c.b16 %v518, %v516
        %v521 = vpack.c.b16 %v519, %v517
        %v524 = vmul.bf16 %v509, %v520
        %v525 = vmul.bf16 %v510, %v521
        %v526 = vld [vmem:[%s2] sm:$0xff]
        %v527 = vld [vmem:[%s2 + $0x8] sm:$0xff]
        %v528 = vld [vmem:[%s4] sm:$0xff]
        %v529 = vld [vmem:[%s4 + $0x8] sm:$0xff]
        %531 = vset.pattern.permute.xlu0 0
        %532 = vperm.xlu0 %531, %v528
        %v533 = vpop.permute.xlu0 %532
        %536 = vset.pattern.permute.xlu0 0
        %537 = vperm.xlu0 %536, %v529
        %v538 = vpop.permute.xlu0 %537
        %v542 = vunpack.c.l.b16 %v526
        %v543 = vunpack.c.h.b16 %v526
        %v544 = vunpack.c.l.b16 %v527
        %v545 = vunpack.c.h.b16 %v527
        %v546 = vpack.c.b16 %v544, %v542
        %v547 = vpack.c.b16 %v545, %v543
        %vm549 = vcmask 130048
        %v551 = vsel %vm549, %v547, 0
        %553 = vmatprep.subr.bf16.mxu0 %v313
        %554 = vmatpush1.bf16.msra.mxu0 %v312
        %555 = vmatprep.subr.bf16.mxu0 %v343
        %556 = vmatpush1.bf16.msra.mxu0 %v342
        %557 = vmatprep.subr.bf16.mxu0 %v373
        %558 = vmatpush1.bf16.msra.mxu0 %v372
        %559 = vmatprep.subr.bf16.mxu0 %v403
        %560 = vmatpush1.bf16.msra.mxu0 %v402
        %561 = vmatprep.subr.bf16.mxu0 %v405
        %562 = vmatpush1.bf16.msra.mxu0 %v404
        %563 = vmatprep.subr.bf16.mxu0 %v435
        %564 = vmatpush1.bf16.msra.mxu0 %v434
        %565 = vmatprep.subr.bf16.mxu0 %v465
        %566 = vmatpush1.bf16.msra.mxu0 %v464
        %567 = vmatprep.subr.bf16.mxu0 %v495
        %568 = vmatpush1.bf16.msra.mxu0 %v494
        %569 = vmatprep.subr.bf16.mxu0 %v525
        %570 = vmatpush1.bf16.msra.mxu0 %v524
        %571 = vmatprep.subr.bf16.mxu0 0
        %572 = vmatpush1.bf16.msra.mxu0 0
        %573 = vmatprep.subr.bf16.mxu0 0
        %574 = vmatpush1.bf16.msra.mxu0 0
        %575 = vmatprep.subr.bf16.mxu0 0
        %576 = vmatpush1.bf16.msra.mxu0 0
        %577 = vmatprep.subr.bf16.mxu0 0
        %578 = vmatpush1.bf16.msra.mxu0 0
        %579 = vmatprep.subr.bf16.mxu0 0
        %580 = vmatpush1.bf16.msra.mxu0 0
        %581 = vmatprep.subr.bf16.mxu0 0
        %582 = vmatpush1.bf16.msra.mxu0 0
        %583 = vmatprep.subr.bf16.mxu0 0
        %584 = vmatpush1.bf16.msra.mxu0 0
        %585 = vmatprep.mubr.bf16.mxu0 %v551
        %586 = vmatmul.mubr.bf16.gmra.mrb[0].mxu0 %v546
        %v587 = vpop.f32.mrb[0].mxu0
        %v588 = vadd.f32 %v533, %v587
        %v589 = vpop.f32.mrb[0].mxu0
        %v590 = vadd.f32 %v533, %v589
        %v591 = vpop.f32.mrb[0].mxu0
        %v592 = vadd.f32 %v538, %v591
        %v593 = vpop.f32.mrb[0].mxu0
        %v594 = vadd.f32 %v538, %v593
        %595 = vdwg.mxu0
        %v596 = vmax.f32 %v588, 0.0
        %v597 = vmax.f32 %v590, 0.0
        %v598 = vmax.f32 %v592, 0.0
        %v599 = vmax.f32 %v594, 0.0
        %v600 = vld [vmem:[%s3] sm:$0xf]
        %v601 = vld [vmem:[%s3 + $0x4] sm:$0xf]
        %v602 = vpack.c.bf16 %v598, %v596
        %v603 = vpack.c.bf16 %v599, %v597
        %v606 = vunpack.c.l.b16 %v600
        %v607 = vunpack.c.l.b16 %v601
        %v608 = vpack.c.b16 %v607, %v606
        %v610 = vsel %vm549, %v608, 0
        %612 = vmatprep.subr.bf16.mxu0 %v603
        %613 = vmatpush1.bf16.msra.mxu0 %v602
        %614 = vmatprep.subr.bf16.mxu0 0
        %615 = vmatpush1.bf16.msra.mxu0 0
        %616 = vmatprep.subr.bf16.mxu0 0
        %617 = vmatpush1.bf16.msra.mxu0 0
        %618 = vmatprep.subr.bf16.mxu0 0
        %619 = vmatpush1.bf16.msra.mxu0 0
        %620 = vmatprep.subr.bf16.mxu0 0
        %621 = vmatpush1.bf16.msra.mxu0 0
        %622 = vmatprep.subr.bf16.mxu0 0
        %623 = vmatpush1.bf16.msra.mxu0 0
        %624 = vmatprep.subr.bf16.mxu0 0
        %625 = vmatpush1.bf16.msra.mxu0 0
        %626 = vmatprep.subr.bf16.mxu0 0
        %627 = vmatpush1.bf16.msra.mxu0 0
        %628 = vmatprep.subr.bf16.mxu0 0
        %629 = vmatpush1.bf16.msra.mxu0 0
        %630 = vmatprep.subr.bf16.mxu0 0
        %631 = vmatpush1.bf16.msra.mxu0 0
        %632 = vmatprep.subr.bf16.mxu0 0
        %633 = vmatpush1.bf16.msra.mxu0 0
        %634 = vmatprep.subr.bf16.mxu0 0
        %635 = vmatpush1.bf16.msra.mxu0 0
        %636 = vmatprep.subr.bf16.mxu0 0
        %637 = vmatpush1.bf16.msra.mxu0 0
        %638 = vmatprep.subr.bf16.mxu0 0
        %639 = vmatpush1.bf16.msra.mxu0 0
        %640 = vmatprep.subr.bf16.mxu0 0
        %641 = vmatpush1.bf16.msra.mxu0 0
        %642 = vmatprep.subr.bf16.mxu0 0
        %643 = vmatpush1.bf16.msra.mxu0 0
        %644 = vmatprep.mubr.bf16.mxu0 0
        %645 = vmatmul.mubr.bf16.gmra.mrb[0].mxu0 %v610
        %v646 = vpop.f32.mrb[0].mxu0
        %v647 = vadd.f32 0.0, %v646
        %v648 = vpop.f32.mrb[0].mxu0
        %v649 = vadd.f32 0.0, %v648
        %v650 = vpop.f32.mrb[0].mxu0
        %v651 = vadd.f32 0.0, %v650
        %v652 = vpop.f32.mrb[0].mxu0
        %v653 = vadd.f32 0.0, %v652
        %654 = vdwg.mxu0
        %v655 = vadd.f32 %v275, %v647
        %v656 = vadd.f32 %v276, %v649
        %v657 = vadd.f32 %v277, %v651
        %v658 = vadd.f32 %v278, %v653
        %v659 = vld [vmem:[%s5] sm:$0xff]
        %v660 = vld [vmem:[%s5 + $0x8] sm:$0xff]
        %662 = vset.pattern.permute.xlu0 0
        %663 = vperm.xlu0 %662, %v659
        %v664 = vpop.permute.xlu0 %663
        %667 = vset.pattern.permute.xlu0 0
        %668 = vperm.xlu0 %667, %v660
        %v669 = vpop.permute.xlu0 %668
        %v671 = vadd.f32 %v655, %v664
        %v672 = vadd.f32 %v656, %v664
        %v673 = vadd.f32 %v657, %v669
        %v674 = vadd.f32 %v658, %v669
        %675 = vst [vmem:[%s271] sm:$0xff] %v671
        %676 = vst [vmem:[%s271 + $0x8] sm:$0xff] %v672
        %677 = vst [vmem:[%s271 + $0x10] sm:$0xff] %v673
        %678 = vst [vmem:[%s271 + $0x18] sm:$0xff] %v674
        %s679 = sand.u32 %s156, 1
        %s680 = sand.u32 %s156, 1
        %s681 = smul.addr %s680, 32
        %s682 = scalar_lea.vmem [#allocation3], %s681
        // Predicated region
        $region68: #{resblock_forward.1} parent=62 // pred_check
          %p683 = pneg %p166
        $region69: #{resblock_forward.1} parent=62 // pred_check_branch
          %685 = sbr.rel (%p683) target = $region71
        $region70: #{resblock_forward.1} parent=62 // pred_region
          %s686 = smul.u32 2, %s17
          %s687 = smul.addr %s686, 8
          %s688 = scalar_lea.vmem %s6, %s687
          // Predicated region
          $region72: #{resblock_forward.1} parent=70 // pred_check
            _
          $region73: #{resblock_forward.1} parent=70 // pred_check_branch
            %690 = sbr.rel (0) target = $region75
          $region74: #{resblock_forward.1} parent=70 // pred_region
            // Predicated region
            $region76: #{resblock_forward.1} parent=74 // pred_check
              _
            $region77: #{resblock_forward.1} parent=74 // pred_check_branch
              %692 = sbr.rel (0) target = $region79
            $region78: #{resblock_forward.1} parent=74 // pred_region
              loop: start=0, step=1, limit=1
              $region80: #{resblock_forward.1} parent=78 // loop_pre_header
                _
              $region81: #{resblock_forward.1} parent=78 // loop_header
                %s694 = sphi 0, %s698
                %p695 = scmp.ge.s32.totalorder %s694, 1
                %s699 = sphi %s682, %s682
                %s700 = sphi %s688, %s688
              $region82: #{resblock_forward.1} parent=78 // loop_header_branch
                %697 = sbr.rel (%p695) target = $region86
              $region83: #{resblock_forward.1} parent=78 // loop_body
                %v701 = vld [vmem:[%s699] sm:$0xff]
                %702 = vst [vmem:[%s700] sm:$0xff] %v701
                %v703 = vld [vmem:[%s699 + $0x8] sm:$0xff]
                %704 = vst [vmem:[%s700 + $0x8] sm:$0xff] %v703
                %v705 = vld [vmem:[%s699 + $0x10] sm:$0xff]
                %706 = vst [vmem:[%s700 + $0x20] sm:$0xff] %v705
                %v707 = vld [vmem:[%s699 + $0x18] sm:$0xff]
                %708 = vst [vmem:[%s700 + $0x28] sm:$0xff] %v707
              $region84: #{resblock_forward.1} parent=78 // loop_footer
                %s698 = sadd.s32 1, %s694
              $region85: #{resblock_forward.1} parent=78 // loop_footer_branch
                %693 = sbr.rel target = $region81
              $region86: #{resblock_forward.1} parent=78 // loop_exit
                _
            $region79: #{resblock_forward.1} parent=74 // pred_fallthru
              _
            // Predicated region
            $region87: #{resblock_forward.1} parent=74 // pred_check
              _
            $region88: #{resblock_forward.1} parent=74 // pred_check_branch
              %710 = sbr.rel target = $region90
            $region89: #{resblock_forward.1} parent=74 // pred_region
              _
            $region90: #{resblock_forward.1} parent=74 // pred_fallthru
              _
          $region75: #{resblock_forward.1} parent=70 // pred_fallthru
            _
          %711 = vnop
        $region71: #{resblock_forward.1} parent=62 // pred_fallthru
          _
      $region63: #{resblock_forward.1} parent=5 // pred_fallthru
        _
      %p712 = scmp.le.s32.totalorder 2, %s12
      // Predicated region
      $region91: #{resblock_forward.1} parent=5 // pred_check
        %p713 = pneg %p712
      $region92: #{resblock_forward.1} parent=5 // pred_check_branch
        %715 = sbr.rel (%p713) target = $region94
      $region93: #{resblock_forward.1} parent=5 // pred_region
        %s716 = ssub.s32 %s12, 2
        // Predicated region
        $region95: #{resblock_forward.1} parent=93 // pred_check
          %p717 = pneg %p172
        $region96: #{resblock_forward.1} parent=93 // pred_check_branch
          %719 = sbr.rel (%p717) target = $region98
        $region97: #{resblock_forward.1} parent=93 // pred_region
          %s720 = sand.u32 %s157, 1
          %s721 = sand.u32 %s157, 1
          %s722 = smul.addr %s721, 32
          %s723 = scalar_lea.vmem [#allocation3], %s722
        $region98: #{resblock_forward.1} parent=93 // pred_fallthru
          _
      $region94: #{resblock_forward.1} parent=5 // pred_fallthru
        _
    $region6: #{resblock_forward.1} parent=1 // loop_footer
      %s16 = sadd.s32 1, %s12
    $region7: #{resblock_forward.1} parent=1 // loop_footer_branch
      %11 = sbr.rel target = $region3
    $region8: #{resblock_forward.1} parent=1 // loop_exit
      _

</llo_original>
